<compile_context>
chip_gen: v6e
topology: v6e:2x2x1
jax: 0.10.0
libtpu: 0.0.40
codegen_flags: <defaults>
</compile_context>

<pallas_src>
import jax
import jax.numpy as jnp
import numpy as np
from jax.experimental import pallas as pl
from jax.experimental.pallas import tpu as pltpu

EPS = 1e-5
NEG_SLOPE = 0.01                 # PyTorch LeakyReLU default
PACK = 8                         # spatial pixels folded into the lane axis (8*4*C = 128 lanes)
VMEM_LIMIT = 32 * 1024 * 1024    # conservative: fits v7x's smaller VMEM as well


def _gram_kernel(p_ref, gram_ref):
    """Stats pass: accumulate the patch Gram  G += P_tile^T @ P_tile."""
    @pl.when(pl.program_id(1) == 0)
    def _():
        gram_ref[...] = jnp.zeros_like(gram_ref)

    p = p_ref[...].astype(jnp.float32)
    gram_ref[...] += jax.lax.dot_general(
        p, p, dimension_numbers=(((0,), (0,)), ((), ())),
        preferred_element_type=jnp.float32)


def _apply_kernel(p_ref, w_ref, scale_ref, shift_ref, x2_ref, o_ref):
    """Main pass: y = patches @ W_blockdiag, BN affine, LeakyReLU, + x2."""
    y = jnp.dot(p_ref[...], w_ref[...], preferred_element_type=jnp.float32)
    yhat = y * scale_ref[...] + shift_ref[...]
    act = jnp.where(yhat > 0, yhat, NEG_SLOPE * yhat)
    o_ref[...] = act + x2_ref[...]


def up_forward(x1, x2, weight, gamma, beta, *, tm=4096):
    """x1: (N, Cin, H, W), x2: (N, Cout, 2H, 2W), weight: (Cin, Cout, 3, 3).

    Polyphase decomposition of the stride-2 transposed conv (K=3, padding=1,
    output_padding=1): each input pixel's 2x2 neighbourhood maps to all four
    output-pixel parities via a single small weight matrix.  8 pixels are
    packed per row so every tile is 128 lanes wide.
    """
    N, Cin, H, W = x1.shape
    Ci_w, Cout, K, Kw = weight.shape
    assert Ci_w == Cin and K == 3 and Kw == 3, "polyphase path specialised to K=3, padding=1"
    OH, OW = 2 * H, 2 * W
    assert x2.shape == (N, Cout, OH, OW)

    CK, Cc = 4 * Cin, 4 * Cout
    Lp, Lc = PACK * CK, PACK * Cc          # packed lane widths (=128 for Cin=Cout=4)
    Mpix = N * H * W

    # ---- tile / grid geometry (packed rows of PACK pixels each) ----
    rows_needed = pl.cdiv(Mpix, PACK)
    tm = max(16, min(tm, ((rows_needed + 15) // 16) * 16))
    tm -= tm % 16                          # bf16 sublane granularity
    n_tiles = pl.cdiv(rows_needed, tm)
    if n_tiles % 2:
        n_tiles += 1                       # even tile count: 2-way stats split (v7x megacore)
    n_half = n_tiles // 2
    mp_rows = n_tiles * tm
    mp_pix = mp_rows * PACK

    # ---- polyphase patches: 2x2 input neighbourhood of each input pixel ----
    # TODO(synk): pat / x2 / out (de)interleaves are still XLA relayouts in HBM; folding them
    # into the kernel (halo DMA + in-kernel transpose) would cut total traffic further.
    x1p = jnp.pad(x1, ((0, 0), (0, 0), (0, 1), (0, 1)))              # bottom/right zero halo
    taps = [x1p[:, :, dh:dh + H, dw:dw + W] for dh in (0, 1) for dw in (0, 1)]
    pat = (jnp.stack(taps, axis=0)
           .reshape(2, 2, N, Cin, H, W)
           .transpose(2, 4, 5, 0, 1, 3)                              # (n, ih, iw, dh, dw, ci)
           .reshape(Mpix, CK)
           .astype(jnp.bfloat16))
    pat = jnp.pad(pat, ((0, mp_pix - Mpix), (0, 0))).reshape(mp_rows, Lp)

    # ---- combined polyphase weight: rows (dh,dw,ci) -> cols (ph,pw,co) ----
    w_flip = weight[:, :, ::-1, ::-1].astype(jnp.float32)            # correlation taps
    tap_map = {(0, 0): 1, (1, 0): 0, (1, 1): 2}                      # (phase, d) -> kernel tap
    w_all = jnp.zeros((2, 2, Cin, 2, 2, Cout), jnp.float32)
    for (ph, dh), kh in tap_map.items():
        for (pw, dw), kw in tap_map.items():
            w_all = w_all.at[dh, dw, :, ph, pw, :].set(w_flip[:, :, kh, kw])
    w_mat = w_all.reshape(CK, Cc)
    w_bf = w_mat.astype(jnp.bfloat16)
    w_big = jnp.kron(jnp.eye(PACK, dtype=jnp.bfloat16), w_bf)        # (Lp, Lc) block-diag, resident

    # ---- x2 in the packed (row = pixel//8, lane = (pixel%8, ph, pw, co)) layout ----
    x2_rows = (x2.reshape(N, Cout, H, 2, W, 2)
               .transpose(0, 2, 4, 3, 5, 1)
               .reshape(Mpix, Cc)
               .astype(jnp.float32))
    x2_rows = jnp.pad(x2_rows, ((0, mp_pix - Mpix), (0, 0))).reshape(mp_rows, Lc)

    # ---- pass 1: accumulate the patch Gram (2-way split over a parallel axis) ----
    gram_parts = pl.pallas_call(
        _gram_kernel,
        out_shape=jax.ShapeDtypeStruct((2 * Lp, Lp), jnp.float32),
        grid=(2, n_half),
        in_specs=[pl.BlockSpec((tm, Lp), lambda c, i: (c * n_half + i, 0))],
        out_specs=pl.BlockSpec((Lp, Lp), lambda c, i: (c, 0)),
        compiler_params=pltpu.CompilerParams(
            dimension_semantics=("parallel", "arbitrary"),
            vmem_limit_bytes=VMEM_LIMIT),
    )(pat)

    # ---- BatchNorm statistics, recovered analytically (no second conv matmul) ----
    #   col_sum(Y)   = rowsum(P) @ W          (rowsum(P) straight from x1, f32)
    #   col_sumsq(Y) = diag(W^T (P^T P) W)
    # NOTE: var = E[y^2] - E[y]^2 can cancel for large activations; clamped at 0 (inference use).
    gram_big = gram_parts.reshape(2, Lp, Lp).sum(axis=0)
    gram = jnp.einsum('aiaj->ij', gram_big.reshape(PACK, CK, PACK, CK))   # fold pixel blocks
    x1f = x1.astype(jnp.float32)
    rowsum_p = jnp.stack([x1f[:, :, dh:, dw:].sum(axis=(0, 2, 3))
                          for dh in (0, 1) for dw in (0, 1)], axis=0).reshape(CK)
    w32 = w_bf.astype(jnp.float32)                                    # matches pass-2 bf16 weights
    col_sum = rowsum_p @ w32                                          # (Cc,)
    col_sq = jnp.sum(w32 * (gram @ w32), axis=0)                      # (Cc,) = diag(W^T G W)

    count = jnp.float32(N * OH * OW)                                  # elements per channel
    ch_sum = col_sum.reshape(4, Cout).sum(axis=0)
    ch_sq = col_sq.reshape(4, Cout).sum(axis=0)
    mean = ch_sum / count
    var = jnp.maximum(ch_sq / count - mean * mean, 0.0)               # biased var (PyTorch BN)
    scale_c = gamma.astype(jnp.float32) * jax.lax.rsqrt(var + EPS)
    shift_c = beta.astype(jnp.float32) - mean * scale_c
    scale = jnp.tile(scale_c, PACK * 4).reshape(1, Lc)
    shift = jnp.tile(shift_c, PACK * 4).reshape(1, Lc)

    # ---- pass 2: conv matmul + BN affine + LeakyReLU + residual add ----
    out_rows = pl.pallas_call(
        _apply_kernel,
        out_shape=jax.ShapeDtypeStruct((mp_rows, Lc), jnp.float32),
        grid=(n_tiles,),
        in_specs=[
            pl.BlockSpec((tm, Lp), lambda i: (i, 0)),   # packed patches (bf16)
            pl.BlockSpec((Lp, Lc), lambda i: (0, 0)),   # block-diag weight (resident)
            pl.BlockSpec((1, Lc), lambda i: (0, 0)),    # BN scale
            pl.BlockSpec((1, Lc), lambda i: (0, 0)),    # BN shift
            pl.BlockSpec((tm, Lc), lambda i: (i, 0)),   # residual x2
        ],
        out_specs=pl.BlockSpec((tm, Lc), lambda i: (i, 0)),
        compiler_params=pltpu.CompilerParams(
            dimension_semantics=("parallel",), vmem_limit_bytes=VMEM_LIMIT),
    )(pat, w_big, scale, shift, x2_rows)

    out = (out_rows.reshape(mp_pix, Cc)[:Mpix]
           .reshape(N, H, W, 2, 2, Cout)
           .transpose(0, 5, 1, 3, 2, 4)                               # (n, co, ih, ph, iw, pw)
           .reshape(N, Cout, OH, OW))
    return out


def _reference(x1, x2, weight, gamma, beta, *, padding=1, output_padding=1):
    """Pure-JAX f32 reference using lax dilated conv (independent of the kernel path)."""
    K = weight.shape[-1]
    w_conv = jnp.flip(weight, axis=(-2, -1)).transpose(1, 0, 2, 3)    # (Cout, Cin, K, K)
    lead = K - 1 - padding
    trail = K - 1 - padding + output_padding
    y = jax.lax.conv_general_dilated(
        x1, w_conv, window_strides=(1, 1),
        padding=[(lead, trail), (lead, trail)],
        lhs_dilation=(2, 2), rhs_dilation=(1, 1),
        dimension_numbers=("NCHW", "OIHW", "NCHW"))
    mean = y.mean(axis=(0, 2, 3), keepdims=True)
    var = ((y - mean) ** 2).mean(axis=(0, 2, 3), keepdims=True)
    yhat = (y - mean) * jax.lax.rsqrt(var + EPS) * gamma[None, :, None, None] + beta[None, :, None, None]
    act = jnp.where(yhat > 0, yhat, NEG_SLOPE * yhat)
    return act + x2


if __name__ == "__main__":
    # up(in_ch=4, out_ch=4, kernel_size=3, padding=1, square_kernel=True)
    N, Cin, Cout, H, W, K = 2, 4, 4, 16, 16, 3
    OH = OW = 2 * H   # (H-1)*2 - 2*1 + 3 + 1 = 2H

    key = jax.random.PRNGKey(0)
    k1, k2, k3 = jax.random.split(key, 3)
    x1 = jax.random.normal(k1, (N, Cin, H, W), jnp.float32)
    x2 = jax.random.normal(k2, (N, Cout, OH, OW), jnp.float32)
    weight = 0.1 * jax.random.normal(k3, (Cin, Cout, K, K), jnp.float32)  # ConvTranspose2d weight (in, out, kH, kW)
    gamma = 1.0 + 0.1 * jnp.arange(Cout, dtype=jnp.float32)   # BatchNorm2d weight
    beta = 0.05 * jnp.arange(Cout, dtype=jnp.float32)         # BatchNorm2d bias
    # TODO(synk): running_mean/running_var buffer updates (in-place module state) are not
    # modeled; forward uses training-mode batch statistics, matching a freshly built module.

    # tm=16 packed rows so the toy problem (512 pixels -> 64 packed rows) exercises the
    # multi-tile Gram accumulation and the 2-way stats split; default tm=4096 for real sizes.
    out = up_forward(x1, x2, weight, gamma, beta, tm=16)
    jax.block_until_ready(out)

    ref = _reference(x1, x2, weight, gamma, beta)
    # bf16 matmul operands (f32 accumulate) -> compare against the f32 reference
    # with bf16-appropriate tolerances.
    np.testing.assert_allclose(np.asarray(out), np.asarray(ref), rtol=2e-2, atol=2e-2)
    print("KERNEL_OK")
</pallas_src>

<mosaic_0001>
module attributes {stable_mosaic.version = 11 : i64} {
  func.func @_gram_kernel(%arg0: i32, %arg1: i32, %arg2: memref<16x128xbf16, #tpu.memory_space<vmem>>, %arg3: memref<128x128xf32, #tpu.memory_space<vmem>>) attributes {dimension_semantics = [#tpu.dimension_semantics<parallel>, #tpu.dimension_semantics<arbitrary>], iteration_bounds = array<i64: 2, 2>, scalar_prefetch = 0 : i64, scratch_operands = 0 : i64, tpu.core_type = #tpu.core_type<tc>, window_params = [{transform_indices = @transform_0, window_bounds = array<i64: 16, 128>}, {transform_indices = @transform_1, window_bounds = array<i64: 128, 128>}]} {
    %c0_i32 = arith.constant 0 : i32
    %0 = arith.cmpi eq, %arg1, %c0_i32 : i32
    %1 = arith.extui %0 : i1 to i32
    %c0_i32_0 = arith.constant 0 : i32
    %2 = arith.cmpi ne, %1, %c0_i32_0 : i32
    scf.if %2 {
      %cst_6 = arith.constant 0.000000e+00 : f32
      %9 = vector.broadcast %cst_6 : f32 to vector<128x128xf32>
      %c0_7 = arith.constant 0 : index
      %c0_8 = arith.constant 0 : index
      %10 = vector.load %arg3[%c0_7, %c0_8] : memref<128x128xf32, #tpu.memory_space<vmem>>, vector<128x128xf32>
      tpu.vector_store %arg3[%c0_7, %c0_8], %9 {strides = array<i32>} : memref<128x128xf32, #tpu.memory_space<vmem>>, vector<128x128xf32>,
    } else {
    }
    %c0 = arith.constant 0 : index
    %c0_1 = arith.constant 0 : index
    %3 = vector.load %arg2[%c0, %c0_1] : memref<16x128xbf16, #tpu.memory_space<vmem>>, vector<16x128xbf16>
    %4 = arith.extf %3 : vector<16x128xbf16> to vector<16x128xf32>
    %c0_2 = arith.constant 0 : index
    %c0_3 = arith.constant 0 : index
    %5 = vector.load %arg3[%c0_2, %c0_3] : memref<128x128xf32, #tpu.memory_space<vmem>>, vector<128x128xf32>
    %cst = arith.constant dense<0.000000e+00> : vector<128x128xf32>
    %6 = tpu.matmul %4, %4, %cst {dimension_numbers = #tpu.dot_dimension_numbers<[0], [0], [1], [1], [0, 1, 1, 1], [], []>} : vector<16x128xf32>, vector<16x128xf32>, vector<128x128xf32> -> vector<128x128xf32>
    %7 = arith.addf %5, %6 : vector<128x128xf32>
    %c0_4 = arith.constant 0 : index
    %c0_5 = arith.constant 0 : index
    %8 = vector.load %arg3[%c0_4, %c0_5] : memref<128x128xf32, #tpu.memory_space<vmem>>, vector<128x128xf32>
    tpu.vector_store %arg3[%c0_4, %c0_5], %7 {strides = array<i32>} : memref<128x128xf32, #tpu.memory_space<vmem>>, vector<128x128xf32>,
    return
  }
  func.func @transform_0(%arg0: i32, %arg1: i32) -> (i32, i32) {
    %c2_i32 = arith.constant 2 : i32
    %0 = arith.muli %arg0, %c2_i32 : i32
    %1 = arith.addi %0, %arg1 : i32
    %c0_i32 = arith.constant 0 : i32
    %c0_i32_0 = arith.constant 0 : i32
    return %1, %c0_i32 : i32, i32
  }
  func.func @transform_1(%arg0: i32, %arg1: i32) -> (i32, i32) {
    %c0_i32 = arith.constant 0 : i32
    %c0_i32_0 = arith.constant 0 : i32
    return %arg0, %c0_i32 : i32, i32
  }
}

</mosaic_0001>

<llo_original>
// kernel: tpu_custom_call.1
$region0: #{tpu_custom_call.1}
  #allocation0 [shape = 'u32[]', space=smem, size = 0x4, offset = 0x4, fixed_abs, tag = 'smem constant byte address 0x4 - core index']
  #allocation1 [shape = 'u32[144,128]{1,0:T(1,128)}', space=vmem, size = 0x12000, scoped, tag = 'internal scratch']
  %s0 = inlined_call_operand.hbm [shape: bf16[64,128], index: 0, kind: input, shape index: {}]
  %s1 = inlined_call_operand.hbm [shape: f32[256,128], index: 1, kind: output, shape index: {}]
  %s2 = sld [smem:[#allocation0]]
  $region45: #{tpu_custom_call.1} parent=0
    _
  %s4 = ssub.s32 1, %s2
  %s5 = scalar_select 0, %s4, %s2
  $region1: #{tpu_custom_call.1} parent=0
    #allocation2 [shape = 'u8[8192]{0}', space=vmem, size = 0x2000, scoped, tag = 'input window, operand 0']
    #allocation3 [shape = 's32[2]{0}', space=sflag, size = 0x8, scoped, tag = 'scoped memory for tpu_custom_call.1']
    #allocation4 [shape = 's32[2]{0}', space=sflag, size = 0x8, scoped, tag = 'scoped memory for tpu_custom_call.1']
    #allocation5 [shape = 'u8[131072]{0}', space=vmem, size = 0x20000, scoped, tag = 'output window, operand 0']
    %6 = vsyncpa [#allocation3], 0
    %s7 = scalar_lea.sflag [#allocation3], 1
    %8 = vsyncpa %s7, 0
    %9 = vsyncpa [#allocation4], 0
    %s10 = scalar_lea.sflag [#allocation4], 1
    %11 = vsyncpa %s10, 0
    loop: start=0, step=1, limit=6
    $region2: #{tpu_custom_call.1} parent=1 // loop_pre_header
      _
    $region3: #{tpu_custom_call.1} parent=1 // loop_header
      %s13 = sphi 0, %s17
      %p14 = scmp.ge.s32.totalorder %s13, 6
      %s20 = sphi 0, %s32
      %s21 = sphi 0, %s28
      %s22 = sphi 0, %s20
      %s23 = sphi 0, %s21
      %s24 = sphi 0, %s22
      %s25 = sphi 0, %s23
      %s39 = sphi 0, %s41
      %s42 = sphi 0, %s39
      %s43 = sphi 0, %s42
      %s59 = sphi 0, %s43
      %s65 = sphi 0, %s67
      %s68 = sphi 0, %s65
      %s69 = sphi 0, %s68
      %s85 = sphi 0, %s69
    $region4: #{tpu_custom_call.1} parent=1 // loop_header_branch
      %16 = sbr.rel (%p14) target = $region8
    $region5: #{tpu_custom_call.1} parent=1 // loop_body
      %s18 = ssub.s32 %s13, 1
      %s19 = ssub.s32 %s13, 2
      %s26 = sadd.s32 1, %s21
      %p27 = scmp.ge.s32.totalorder %s26, 2
      %s28 = scalar_select %p27, 0, %s26
      %s29 = sadd.s32 1, %s20
      %s30 = scalar_select %p27, %s29, %s20
      %p31 = scmp.ge.s32.totalorder %s30, 2
      %s32 = scalar_select %p31, 0, %s30
      %s33 = smul.u32 %s20, 2
      %s34 = sadd.s32 %s33, %s21
      %s35 = smul.u32 %s32, 2
      %s36 = sadd.s32 %s35, %s28
      %s37 = ssub.s32 %s34, %s36
      %p38 = scmp.eq.s32.totalorder %s37, 0
      %s40 = sadd.s32 %s39, 1
      %s41 = scalar_select %p38, %s39, %s40
      %p44 = pneg %p38
      %p45 = scmp.eq.s32.totalorder %s13, 3
      %p46 = por %p44, %p45
      %p47 = scmp.ne.s32.totalorder %s39, %s42
      %p48 = scmp.eq.s32.totalorder %s13, 0
      %p49 = por %p47, %p48
      %p50 = scmp.ne.s32.totalorder %s39, %s42
      %p51 = scmp.eq.s32.totalorder %s18, 3
      %p52 = por %p50, %p51
      %p53 = scmp.ne.s32.totalorder %s42, %s43
      %p54 = scmp.eq.s32.totalorder %s18, 0
      %p55 = por %p53, %p54
      %p56 = scmp.ne.s32.totalorder %s42, %s43
      %p57 = scmp.eq.s32.totalorder %s19, 3
      %p58 = por %p56, %p57
      %p60 = scmp.ne.s32.totalorder %s43, %s59
      %p61 = scmp.eq.s32.totalorder %s19, 0
      %p62 = por %p60, %p61
      %s63 = ssub.s32 %s20, %s32
      %p64 = scmp.eq.s32.totalorder %s63, 0
      %s66 = sadd.s32 %s65, 1
      %s67 = scalar_select %p64, %s65, %s66
      %p70 = pneg %p64
      %p71 = scmp.eq.s32.totalorder %s13, 3
      %p72 = por %p70, %p71
      %p73 = scmp.ne.s32.totalorder %s65, %s68
      %p74 = scmp.eq.s32.totalorder %s13, 0
      %p75 = por %p73, %p74
      %p76 = scmp.ne.s32.totalorder %s65, %s68
      %p77 = scmp.eq.s32.totalorder %s18, 3
      %p78 = por %p76, %p77
      %p79 = scmp.ne.s32.totalorder %s68, %s69
      %p80 = scmp.eq.s32.totalorder %s18, 0
      %p81 = por %p79, %p80
      %p82 = scmp.ne.s32.totalorder %s68, %s69
      %p83 = scmp.eq.s32.totalorder %s19, 3
      %p84 = por %p82, %p83
      %p86 = scmp.ne.s32.totalorder %s69, %s85
      %p87 = scmp.eq.s32.totalorder %s19, 0
      %p88 = por %p86, %p87
      %p89 = scmp.le.s32.totalorder 1, %s13
      %p90 = scmp.lt.s32.totalorder %s13, 5
      %p91 = pnand %p89, %p90
      %p92 = pneg %p91
      // Predicated region
      $region9: #{tpu_custom_call.1} parent=5 // pred_check
        _
      $region10: #{tpu_custom_call.1} parent=5 // pred_check_branch
        %94 = sbr.rel (%p91) target = $region12
      $region11: #{tpu_custom_call.1} parent=5 // pred_region
        %s95 = ssub.s32 %s13, 1
      $region12: #{tpu_custom_call.1} parent=5 // pred_fallthru
        _
      %p96 = scmp.lt.s32.totalorder %s13, 4
      // Predicated region
      $region13: #{tpu_custom_call.1} parent=5 // pred_check
        %p97 = pneg %p96
      $region14: #{tpu_custom_call.1} parent=5 // pred_check_branch
        %99 = sbr.rel (%p97) target = $region16
      $region15: #{tpu_custom_call.1} parent=5 // pred_region
        // Predicated region
        $region17: #{tpu_custom_call.1} parent=15 // pred_check
          %p100 = pneg %p49
        $region18: #{tpu_custom_call.1} parent=15 // pred_check_branch
          %102 = sbr.rel (%p100) target = $region20
        $region19: #{tpu_custom_call.1} parent=15 // pred_region
          %s103 = sand.u32 %s39, 1
          %s104 = scalar_lea.sflag [#allocation3], %s103
          %s105 = sand.u32 %s39, 1
          %s106 = smul.addr %s105, 8
          %s107 = scalar_lea.vmem [#allocation2], %s106
          %s108 = smul.u32 %s20, 2
          %s109 = sadd.s32 %s108, %s21
          %s110 = smul.u32 2, %s109
          %s112 = ssub.s32 128, 128
          %113 = vsyncadd %s104, %s112
          %s114 = smul.addr %s110, 64
          %s115 = scalar_lea.hbm %s0, %s114
          %s116 = sshll.u32 %s107, 4
          %s117 = int_to_ptr.vmem [resolvable:$true] %s116
          %122 = dma.hbm_to_vmem [thread:$0]  %s115, 128, %s117, %s104, 64, 64, 4
        $region20: #{tpu_custom_call.1} parent=15 // pred_fallthru
          _
      $region16: #{tpu_custom_call.1} parent=5 // pred_fallthru
        _
      %p123 = scmp.le.s32.totalorder 1, %s13
      %p124 = scmp.lt.s32.totalorder %s13, 5
      %p125 = pnand %p123, %p124
      %p126 = pneg %p125
      // Predicated region
      $region21: #{tpu_custom_call.1} parent=5 // pred_check
        _
      $region22: #{tpu_custom_call.1} parent=5 // pred_check_branch
        %128 = sbr.rel (%p125) target = $region24
      $region23: #{tpu_custom_call.1} parent=5 // pred_region
        %s129 = ssub.s32 %s13, 1
        %s130 = sand.u32 %s42, 1
        %s131 = scalar_lea.sflag [#allocation3], %s130
        %s132 = sand.u32 %s42, 1
        %s133 = smul.addr %s132, 8
        %s134 = scalar_lea.vmem [#allocation2], %s133
        // Predicated region
        $region25: #{tpu_custom_call.1} parent=23 // pred_check
          %p135 = pneg %p55
        $region26: #{tpu_custom_call.1} parent=23 // pred_check_branch
          %137 = sbr.rel (%p135) target = $region28
        $region27: #{tpu_custom_call.1} parent=23 // pred_region
          %138 = dma.done %s131, 128
        $region28: #{tpu_custom_call.1} parent=23 // pred_fallthru
          _
        %s139 = sand.u32 %s42, 1
        %s140 = scalar_lea.sflag [#allocation3], %s139
        %s141 = sand.u32 %s42, 1
        %s142 = smul.addr %s141, 8
        %s143 = scalar_lea.vmem [#allocation2], %s142
        %p144 = pneg %p55
        %p145 = pneg %p52
        %p146 = pneg %p81
        %p147 = pneg %p78
        %s148 = sand.u32 %s68, 1
        %s149 = scalar_lea.sflag [#allocation4], %s148
        %s150 = sand.u32 %s68, 1
        %s151 = smul.addr %s150, 128
        %s152 = scalar_lea.vmem [#allocation5], %s151
        %s153 = smul.u32 %s22, 2
        %s154 = sadd.s32 %s153, %s23
        %s155 = smul.u32 2, %s154
        %s156 = smul.u32 16, %s22
        %p157 = scmp.eq.s32.totalorder %s23, 0
        // Predicated region
        $region29: #{tpu_custom_call.1} parent=23 // pred_check
          %p158 = pneg %p157
        $region30: #{tpu_custom_call.1} parent=23 // pred_check_branch
          %160 = sbr.rel (%p158) target = $region32
        $region31: #{tpu_custom_call.1} parent=23 // pred_region
          %161 = vst [vmem:[%s152] sm:$0xff] 0.0
          %162 = vst [vmem:[%s152 + $0x8] sm:$0xff] 0.0
          %163 = vst [vmem:[%s152 + $0x10] sm:$0xff] 0.0
          %164 = vst [vmem:[%s152 + $0x18] sm:$0xff] 0.0
          %165 = vst [vmem:[%s152 + $0x20] sm:$0xff] 0.0
          %166 = vst [vmem:[%s152 + $0x28] sm:$0xff] 0.0
          %167 = vst [vmem:[%s152 + $0x30] sm:$0xff] 0.0
          %168 = vst [vmem:[%s152 + $0x38] sm:$0xff] 0.0
          %169 = vst [vmem:[%s152 + $0x40] sm:$0xff] 0.0
          %170 = vst [vmem:[%s152 + $0x48] sm:$0xff] 0.0
          %171 = vst [vmem:[%s152 + $0x50] sm:$0xff] 0.0
          %172 = vst [vmem:[%s152 + $0x58] sm:$0xff] 0.0
          %173 = vst [vmem:[%s152 + $0x60] sm:$0xff] 0.0
          %174 = vst [vmem:[%s152 + $0x68] sm:$0xff] 0.0
          %175 = vst [vmem:[%s152 + $0x70] sm:$0xff] 0.0
          %176 = vst [vmem:[%s152 + $0x78] sm:$0xff] 0.0
        $region32: #{tpu_custom_call.1} parent=23 // pred_fallthru
          _
        %v177 = vld [vmem:[%s134] sm:$0xf]
        %v178 = vld [vmem:[%s134 + $0x4] sm:$0xf]
        %v179 = vunpack.c.l.bf16 %v177
        %v180 = vunpack.c.l.bf16 %v178
        %v181 = vld [vmem:[%s152] sm:$0xff]
        %v182 = vld [vmem:[%s152 + $0x8] sm:$0xff]
        %v183 = vld [vmem:[%s152 + $0x10] sm:$0xff]
        %v184 = vld [vmem:[%s152 + $0x18] sm:$0xff]
        %v185 = vld [vmem:[%s152 + $0x20] sm:$0xff]
        %v186 = vld [vmem:[%s152 + $0x28] sm:$0xff]
        %v187 = vld [vmem:[%s152 + $0x30] sm:$0xff]
        %v188 = vld [vmem:[%s152 + $0x38] sm:$0xff]
        %v189 = vld [vmem:[%s152 + $0x40] sm:$0xff]
        %v190 = vld [vmem:[%s152 + $0x48] sm:$0xff]
        %v191 = vld [vmem:[%s152 + $0x50] sm:$0xff]
        %v192 = vld [vmem:[%s152 + $0x58] sm:$0xff]
        %v193 = vld [vmem:[%s152 + $0x60] sm:$0xff]
        %v194 = vld [vmem:[%s152 + $0x68] sm:$0xff]
        %v195 = vld [vmem:[%s152 + $0x70] sm:$0xff]
        %v196 = vld [vmem:[%s152 + $0x78] sm:$0xff]
        %197 = vxpose.xlu0.b32.start [1/16] %v179, 128
        %198 = vxpose.xlu0.b32.cont [2/16] %v180, 128
        %199 = vxpose.xlu0.b32.cont [3/16] 0.0, 128
        %200 = vxpose.xlu0.b32.cont [4/16] 0.0, 128
        %201 = vxpose.xlu0.b32.cont [5/16] 0.0, 128
        %202 = vxpose.xlu0.b32.cont [6/16] 0.0, 128
        %203 = vxpose.xlu0.b32.cont [7/16] 0.0, 128
        %204 = vxpose.xlu0.b32.cont [8/16] 0.0, 128
        %205 = vxpose.xlu0.b32.cont [9/16] 0.0, 128
        %206 = vxpose.xlu0.b32.cont [10/16] 0.0, 128
        %207 = vxpose.xlu0.b32.cont [11/16] 0.0, 128
        %208 = vxpose.xlu0.b32.cont [12/16] 0.0, 128
        %209 = vxpose.xlu0.b32.cont [13/16] 0.0, 128
        %210 = vxpose.xlu0.b32.cont [14/16] 0.0, 128
        %211 = vxpose.xlu0.b32.cont [15/16] 0.0, 128
        %212 = vxpose.xlu0.b32.end [16/16] 0.0, 128
        %v213 = vpop.trf.xlu0
        %v214 = vpop.trf.xlu0
        %v215 = vpop.trf.xlu0
        %v216 = vpop.trf.xlu0
        %v217 = vpop.trf.xlu0
        %v218 = vpop.trf.xlu0
        %v219 = vpop.trf.xlu0
        %v220 = vpop.trf.xlu0
        %v221 = vpop.trf.xlu0
        %v222 = vpop.trf.xlu0
        %v223 = vpop.trf.xlu0
        %v224 = vpop.trf.xlu0
        %v225 = vpop.trf.xlu0
        %v226 = vpop.trf.xlu0
        %v227 = vpop.trf.xlu0
        %v228 = vpop.trf.xlu0
        %vm229 = vcmask 130048
        %v231 = vsel %vm229, %v213, 0
        %v234 = vsel %vm229, %v214, 0
        %v237 = vsel %vm229, %v215, 0
        %v240 = vsel %vm229, %v216, 0
        %v243 = vsel %vm229, %v217, 0
        %v246 = vsel %vm229, %v218, 0
        %v249 = vsel %vm229, %v219, 0
        %v252 = vsel %vm229, %v220, 0
        %v255 = vsel %vm229, %v221, 0
        %v258 = vsel %vm229, %v222, 0
        %v261 = vsel %vm229, %v223, 0
        %v264 = vsel %vm229, %v224, 0
        %v267 = vsel %vm229, %v225, 0
        %v270 = vsel %vm229, %v226, 0
        %v273 = vsel %vm229, %v227, 0
        %v276 = vsel %vm229, %v228, 0
        %278 = vmatprep.subr.mxu0 0.0
        %279 = vmatpush1.msra.mxu0 0.0
        %280 = vmatprep.subr.mxu0 0.0
        %281 = vmatpush1.msra.mxu0 0.0
        %282 = vmatprep.subr.mxu0 0.0
        %283 = vmatpush1.msra.mxu0 0.0
        %284 = vmatprep.subr.mxu0 0.0
        %285 = vmatpush1.msra.mxu0 0.0
        %286 = vmatprep.subr.mxu0 0.0
        %287 = vmatpush1.msra.mxu0 0.0
        %288 = vmatprep.subr.mxu0 0.0
        %289 = vmatpush1.msra.mxu0 0.0
        %290 = vmatprep.subr.mxu0 0.0
        %291 = vmatpush1.msra.mxu0 0.0
        %292 = vmatprep.subr.mxu0 0.0
        %293 = vmatpush1.msra.mxu0 0.0
        %294 = vmatprep.subr.mxu0 0.0
        %295 = vmatpush1.msra.mxu0 0.0
        %296 = vmatprep.subr.mxu0 0.0
        %297 = vmatpush1.msra.mxu0 0.0
        %298 = vmatprep.subr.mxu0 0.0
        %299 = vmatpush1.msra.mxu0 0.0
        %300 = vmatprep.subr.mxu0 0.0
        %301 = vmatpush1.msra.mxu0 0.0
        %302 = vmatprep.subr.mxu0 0.0
        %303 = vmatpush1.msra.mxu0 0.0
        %304 = vmatprep.subr.mxu0 0.0
        %305 = vmatpush1.msra.mxu0 0.0
        %306 = vmatprep.subr.mxu0 0.0
        %307 = vmatpush1.msra.mxu0 %v180
        %308 = vmatprep.subr.mxu0 0.0
        %309 = vmatpush1.msra.mxu0 %v179
        %310 = vmatprep.subr.mxu0 0.0
        %311 = vmatpush2.msra.mxu0 0.0
        %312 = vmatprep.subr.mxu0 0.0
        %313 = vmatpush2.msra.mxu0 0.0
        %314 = vmatprep.subr.mxu0 0.0
        %315 = vmatpush2.msra.mxu0 0.0
        %316 = vmatprep.subr.mxu0 0.0
        %317 = vmatpush2.msra.mxu0 0.0
        %318 = vmatprep.subr.mxu0 0.0
        %319 = vmatpush2.msra.mxu0 0.0
        %320 = vmatprep.subr.mxu0 0.0
        %321 = vmatpush2.msra.mxu0 0.0
        %322 = vmatprep.subr.mxu0 0.0
        %323 = vmatpush2.msra.mxu0 0.0
        %324 = vmatprep.subr.mxu0 0.0
        %325 = vmatpush2.msra.mxu0 0.0
        %326 = vmatprep.subr.mxu0 0.0
        %327 = vmatpush2.msra.mxu0 0.0
        %328 = vmatprep.subr.mxu0 0.0
        %329 = vmatpush2.msra.mxu0 0.0
        %330 = vmatprep.subr.mxu0 0.0
        %331 = vmatpush2.msra.mxu0 0.0
        %332 = vmatprep.subr.mxu0 0.0
        %333 = vmatpush2.msra.mxu0 0.0
        %334 = vmatprep.subr.mxu0 0.0
        %335 = vmatpush2.msra.mxu0 0.0
        %336 = vmatprep.subr.mxu0 0.0
        %337 = vmatpush2.msra.mxu0 0.0
        %338 = vmatprep.subr.mxu0 0.0
        %339 = vmatpush2.msra.mxu0 0.0
        %340 = vmatprep.subr.mxu0 0.0
        %341 = vmatpush2.msra.mxu0 0.0
        %342 = vmatprep.mubr.f32.mxu0 0.0
        %343 = vmatmul.mubr.f32.gmra.mxu0 %v231
        %v344 = vpop.f32.mrf.mxu0
        %v345 = vadd.f32 0.0, %v344
        %v346 = vpop.f32.mrf.mxu0
        %347 = vmatprep.mubr.f32.mxu0 0.0
        %348 = vmatmul.mubr.f32.gmra.mxu0 %v234
        %v349 = vpop.f32.mrf.mxu0
        %v350 = vadd.f32 0.0, %v349
        %v351 = vpop.f32.mrf.mxu0
        %352 = vmatprep.mubr.f32.mxu0 0.0
        %353 = vmatmul.mubr.f32.gmra.mxu0 %v237
        %v354 = vpop.f32.mrf.mxu0
        %v355 = vadd.f32 0.0, %v354
        %v356 = vpop.f32.mrf.mxu0
        %357 = vmatprep.mubr.f32.mxu0 0.0
        %358 = vmatmul.mubr.f32.gmra.mxu0 %v240
        %v359 = vpop.f32.mrf.mxu0
        %v360 = vadd.f32 0.0, %v359
        %v361 = vpop.f32.mrf.mxu0
        %362 = vmatprep.mubr.f32.mxu0 0.0
        %363 = vmatmul.mubr.f32.gmra.mxu0 %v243
        %v364 = vpop.f32.mrf.mxu0
        %v365 = vadd.f32 0.0, %v364
        %v366 = vpop.f32.mrf.mxu0
        %367 = vmatprep.mubr.f32.mxu0 0.0
        %368 = vmatmul.mubr.f32.gmra.mxu0 %v246
        %v369 = vpop.f32.mrf.mxu0
        %v370 = vadd.f32 0.0, %v369
        %v371 = vpop.f32.mrf.mxu0
        %372 = vmatprep.mubr.f32.mxu0 0.0
        %373 = vmatmul.mubr.f32.gmra.mxu0 %v249
        %v374 = vpop.f32.mrf.mxu0
        %v375 = vadd.f32 0.0, %v374
        %v376 = vpop.f32.mrf.mxu0
        %377 = vmatprep.mubr.f32.mxu0 0.0
        %378 = vmatmul.mubr.f32.gmra.mxu0 %v252
        %v379 = vpop.f32.mrf.mxu0
        %v380 = vadd.f32 0.0, %v379
        %v381 = vpop.f32.mrf.mxu0
        %382 = vmatprep.mubr.f32.mxu0 0.0
        %383 = vmatmul.mubr.f32.gmra.mxu0 %v255
        %v384 = vpop.f32.mrf.mxu0
        %v385 = vadd.f32 0.0, %v384
        %v386 = vpop.f32.mrf.mxu0
        %387 = vmatprep.mubr.f32.mxu0 0.0
        %388 = vmatmul.mubr.f32.gmra.mxu0 %v258
        %v389 = vpop.f32.mrf.mxu0
        %v390 = vadd.f32 0.0, %v389
        %v391 = vpop.f32.mrf.mxu0
        %392 = vmatprep.mubr.f32.mxu0 0.0
        %393 = vmatmul.mubr.f32.gmra.mxu0 %v261
        %v394 = vpop.f32.mrf.mxu0
        %v395 = vadd.f32 0.0, %v394
        %v396 = vpop.f32.mrf.mxu0
        %397 = vmatprep.mubr.f32.mxu0 0.0
        %398 = vmatmul.mubr.f32.gmra.mxu0 %v264
        %v399 = vpop.f32.mrf.mxu0
        %v400 = vadd.f32 0.0, %v399
        %v401 = vpop.f32.mrf.mxu0
        %402 = vmatprep.mubr.f32.mxu0 0.0
        %403 = vmatmul.mubr.f32.gmra.mxu0 %v267
        %v404 = vpop.f32.mrf.mxu0
        %v405 = vadd.f32 0.0, %v404
        %v406 = vpop.f32.mrf.mxu0
        %407 = vmatprep.mubr.f32.mxu0 0.0
        %408 = vmatmul.mubr.f32.gmra.mxu0 %v270
        %v409 = vpop.f32.mrf.mxu0
        %v410 = vadd.f32 0.0, %v409
        %v411 = vpop.f32.mrf.mxu0
        %412 = vmatprep.mubr.f32.mxu0 0.0
        %413 = vmatmul.mubr.f32.gmra.mxu0 %v273
        %v414 = vpop.f32.mrf.mxu0
        %v415 = vadd.f32 0.0, %v414
        %v416 = vpop.f32.mrf.mxu0
        %417 = vmatprep.mubr.f32.mxu0 0.0
        %418 = vmatmul.mubr.f32.gmra.mxu0 %v276
        %v419 = vpop.f32.mrf.mxu0
        %v420 = vadd.f32 0.0, %v419
        %v421 = vpop.f32.mrf.mxu0
        %422 = vdwg.mxu0
        %v423 = vadd.f32 %v181, %v345
        %v424 = vadd.f32 %v182, %v350
        %v425 = vadd.f32 %v183, %v355
        %v426 = vadd.f32 %v184, %v360
        %v427 = vadd.f32 %v185, %v365
        %v428 = vadd.f32 %v186, %v370
        %v429 = vadd.f32 %v187, %v375
        %v430 = vadd.f32 %v188, %v380
        %v431 = vadd.f32 %v189, %v385
        %v432 = vadd.f32 %v190, %v390
        %v433 = vadd.f32 %v191, %v395
        %v434 = vadd.f32 %v192, %v400
        %v435 = vadd.f32 %v193, %v405
        %v436 = vadd.f32 %v194, %v410
        %v437 = vadd.f32 %v195, %v415
        %v438 = vadd.f32 %v196, %v420
        %439 = vst [vmem:[%s152] sm:$0xff] %v423
        %440 = vst [vmem:[%s152 + $0x8] sm:$0xff] %v424
        %441 = vst [vmem:[%s152 + $0x10] sm:$0xff] %v425
        %442 = vst [vmem:[%s152 + $0x18] sm:$0xff] %v426
        %443 = vst [vmem:[%s152 + $0x20] sm:$0xff] %v427
        %444 = vst [vmem:[%s152 + $0x28] sm:$0xff] %v428
        %445 = vst [vmem:[%s152 + $0x30] sm:$0xff] %v429
        %446 = vst [vmem:[%s152 + $0x38] sm:$0xff] %v430
        %447 = vst [vmem:[%s152 + $0x40] sm:$0xff] %v431
        %448 = vst [vmem:[%s152 + $0x48] sm:$0xff] %v432
        %449 = vst [vmem:[%s152 + $0x50] sm:$0xff] %v433
        %450 = vst [vmem:[%s152 + $0x58] sm:$0xff] %v434
        %451 = vst [vmem:[%s152 + $0x60] sm:$0xff] %v435
        %452 = vst [vmem:[%s152 + $0x68] sm:$0xff] %v436
        %453 = vst [vmem:[%s152 + $0x70] sm:$0xff] %v437
        %454 = vst [vmem:[%s152 + $0x78] sm:$0xff] %v438
        %s455 = sand.u32 %s68, 1
        %s456 = scalar_lea.sflag [#allocation4], %s455
        %s457 = sand.u32 %s68, 1
        %s458 = smul.addr %s457, 128
        %s459 = scalar_lea.vmem [#allocation5], %s458
        // Predicated region
        $region33: #{tpu_custom_call.1} parent=23 // pred_check
          %p460 = pneg %p78
        $region34: #{tpu_custom_call.1} parent=23 // pred_check_branch
          %462 = sbr.rel (%p460) target = $region36
        $region35: #{tpu_custom_call.1} parent=23 // pred_region
          %s463 = smul.u32 16, %s22
          %s465 = ssub.s32 2048, 2048
          %466 = vsyncadd %s456, %s465
          %s467 = smul.addr %s463, 128
          %s468 = scalar_lea.hbm %s1, %s467
          %s469 = sshll.u32 %s459, 4
          %s470 = int_to_ptr.vmem [resolvable:$true] %s469
          %475 = dma.vmem_to_hbm [thread:$0]  %s470, 2048, %s468, %s456, 128, 128, 8
        $region36: #{tpu_custom_call.1} parent=23 // pred_fallthru
          _
      $region24: #{tpu_custom_call.1} parent=5 // pred_fallthru
        _
      %p476 = scmp.le.s32.totalorder 2, %s13
      // Predicated region
      $region37: #{tpu_custom_call.1} parent=5 // pred_check
        %p477 = pneg %p476
      $region38: #{tpu_custom_call.1} parent=5 // pred_check_branch
        %479 = sbr.rel (%p477) target = $region40
      $region39: #{tpu_custom_call.1} parent=5 // pred_region
        %s480 = ssub.s32 %s13, 2
        // Predicated region
        $region41: #{tpu_custom_call.1} parent=39 // pred_check
          %p481 = pneg %p84
        $region42: #{tpu_custom_call.1} parent=39 // pred_check_branch
          %483 = sbr.rel (%p481) target = $region44
        $region43: #{tpu_custom_call.1} parent=39 // pred_region
          %s484 = sand.u32 %s69, 1
          %s485 = scalar_lea.sflag [#allocation4], %s484
          %s486 = sand.u32 %s69, 1
          %s487 = smul.addr %s486, 128
          %s488 = scalar_lea.vmem [#allocation5], %s487
          %489 = dma.done %s485, 2048
        $region44: #{tpu_custom_call.1} parent=39 // pred_fallthru
          _
      $region40: #{tpu_custom_call.1} parent=5 // pred_fallthru
        _
    $region6: #{tpu_custom_call.1} parent=1 // loop_footer
      %s17 = sadd.s32 1, %s13
    $region7: #{tpu_custom_call.1} parent=1 // loop_footer_branch
      %12 = sbr.rel target = $region3
    $region8: #{tpu_custom_call.1} parent=1 // loop_exit
      _
    %490 = vsyncpa [#allocation3], 1
    %s491 = scalar_lea.sflag [#allocation3], 1
    %492 = vsyncpa %s491, 1
    %493 = vsyncpa [#allocation4], 1
    %s494 = scalar_lea.sflag [#allocation4], 1
    %495 = vsyncpa %s494, 1

</llo_original>
